<compile_context>
chip_gen: v5e
topology: v5e:2x2
jax: 0.10.0
libtpu: 0.0.40
codegen_flags: <defaults>
</compile_context>

<pallas_src>
import functools
import math

import jax
import jax.numpy as jnp
from jax import lax
from jax.experimental import pallas as pl
from jax.experimental.pallas import tpu as pltpu

_VMEM_LIMIT_BYTES = 48 * 1024 * 1024   # explicit scoped limit: > 16/32 MiB defaults, < v7x 64 MiB
_VMEM_BUDGET_BYTES = 40 * 1024 * 1024  # tile-sizing budget (headroom under the limit)


# ----------------------------- tiling helpers -----------------------------
def _round_up(n, m):
    return ((n + m - 1) // m) * m


def _choose_row_tile(n_rows, n_cols, x_bytes):
    """Row tile for the streaming stats pass: multiple of 8, fits the VMEM budget."""
    tr = _VMEM_BUDGET_BYTES // max(1, 2 * n_cols * x_bytes)   # 2x: double-buffered input block
    tr = max(8, min(tr, 1024, _round_up(n_rows, 8)))
    return (tr // 8) * 8


def _choose_time_tile(t, b_p, c, h, x_bytes, w_bytes, out_bytes):
    """Timesteps per grid step of the fused kernel, sized against the VMEM budget."""
    g = 4 * h
    fixed = (2 * (c * g + h * g) * w_bytes     # resident W_ih', W_hh (double-buffered blocks)
             + 2 * g * 4                       # bias
             + 4 * b_p * h * 4                 # h0 / c0 blocks
             + 2 * b_p * h * 4)                # h / c carry scratch
    per_tt = b_p * (2 * c * x_bytes + 2 * h * out_bytes + g * 4)
    cap = max(1, (_VMEM_BUDGET_BYTES - fixed) // per_tt)
    cap = int(min(cap, 128, t))
    best = 1
    for d in range(1, cap + 1):
        if t % d == 0:
            best = d
    return best


# -------------------- BatchNorm column statistics (tiled, streaming) --------------------
def _bn_stats_kernel(x_ref, sum_ref, sq_ref, acc_s, acc_q, *, n_rows, tr):
    i = pl.program_id(0)

    @pl.when(i == 0)
    def _():
        acc_s[...] = jnp.zeros_like(acc_s)
        acc_q[...] = jnp.zeros_like(acc_q)

    x = x_ref[...].astype(jnp.float32)                           # (tr, C)
    if n_rows % tr != 0:                                         # mask ragged last block
        row = i * tr + lax.broadcasted_iota(jnp.int32, (tr, 1), 0)
        x = jnp.where(row < n_rows, x, 0.0)
    xr = x.reshape(tr // 8, 8, x.shape[-1])                      # tile-aligned sublane split
    acc_s[...] += jnp.sum(xr, axis=0)                            # VPU adds (no per-tile XLU reduce)
    acc_q[...] += jnp.sum(xr * xr, axis=0)

    @pl.when(i == pl.num_programs(0) - 1)
    def _():
        sum_ref[...] = jnp.sum(acc_s[...], axis=0, keepdims=True)  # single cross-sublane reduce
        sq_ref[...] = jnp.sum(acc_q[...], axis=0, keepdims=True)


def bn_column_stats(x2):
    """x2: (N, C) -> (per-column sum, per-column sum of squares), each (1, C) f32."""
    n, c = x2.shape
    tr = _choose_row_tile(n, c, x2.dtype.itemsize)
    kernel = functools.partial(_bn_stats_kernel, n_rows=n, tr=tr)
    return pl.pallas_call(
        kernel,
        out_shape=(jax.ShapeDtypeStruct((1, c), jnp.float32),
                   jax.ShapeDtypeStruct((1, c), jnp.float32)),
        grid_spec=pltpu.PrefetchScalarGridSpec(
            num_scalar_prefetch=0,
            grid=(pl.cdiv(n, tr),),
            in_specs=[pl.BlockSpec((tr, c), lambda i: (i, 0))],
            out_specs=[pl.BlockSpec((1, c), lambda i: (0, 0)),
                       pl.BlockSpec((1, c), lambda i: (0, 0))],
            scratch_shapes=[pltpu.VMEM((8, c), jnp.float32),
                            pltpu.VMEM((8, c), jnp.float32)],
        ),
        compiler_params=pltpu.CompilerParams(
            dimension_semantics=("arbitrary",),
            vmem_limit_bytes=_VMEM_LIMIT_BYTES),
    )(x2)


# --------------- fused BN-folded input projection + LSTM recurrence ---------------
def _lstm_fused_kernel(x_ref, wih_ref, b_ref, whh_ref, h0_ref, c0_ref,
                       y_ref, cn_ref, gx_s, h_s, c_s, *, hidden_size, tt, unroll):
    H = hidden_size
    G = 4 * H
    chunk = pl.program_id(0)
    _, Bp, C = x_ref.shape

    @pl.when(chunk == 0)
    def _():
        h_s[...] = h0_ref[...].astype(jnp.float32)
        c_s[...] = c0_ref[...].astype(jnp.float32)

    wih = wih_ref[...]                                           # (C, 4H) resident
    whh = whh_ref[...]                                           # (H, 4H) resident

    # x-path gate pre-activations for the whole chunk: one MXU matmul into VMEM
    # scratch (the (T,B,4H) gates tensor never round-trips through HBM).
    x2 = x_ref[...].reshape(tt * Bp, C).astype(wih.dtype)
    gx = jnp.dot(x2, wih, preferred_element_type=jnp.float32) + b_ref[...]
    gx_s[...] = gx.reshape(tt, Bp, G)

    def step(i, carry):
        h, c = carry                                             # f32 values (no scratch ld/st)
        gates = gx_s[i] + jnp.dot(h.astype(whh.dtype), whh,
                                  preferred_element_type=jnp.float32)   # (Bp, 4H)
        # Gate order is [i, f, o, g]: sigmoid only over the first 3H lanes.
        sg = jax.nn.sigmoid(gates[:, :3 * H])
        i_g = sg[:, 0 * H:1 * H]
        f_g = sg[:, 1 * H:2 * H]
        o_g = sg[:, 2 * H:3 * H]
        g_g = jnp.tanh(gates[:, 3 * H:4 * H])
        c_new = f_g * c + i_g * g_g
        h_new = o_g * jnp.tanh(c_new)
        y_ref[i] = h_new.astype(y_ref.dtype)
        return h_new, c_new

    h_fin, c_fin = lax.fori_loop(0, tt, step, (h_s[...], c_s[...]), unroll=unroll)

    # Carry written once per chunk (not once per timestep).
    h_s[...] = h_fin
    c_s[...] = c_fin
    cn_ref[...] = c_fin.astype(cn_ref.dtype)


def lstm_bn_fused(x_tm, wih_t_folded, bias_row, whh_t, h0, c0, out_dtype):
    """x_tm: (T, Bp, C); wih_t_folded: (C, 4H); whh_t: (H, 4H); h0/c0: (Bp, H)."""
    T, Bp, C = x_tm.shape
    H = whh_t.shape[0]
    G = 4 * H
    tt = _choose_time_tile(T, Bp, C, H, x_tm.dtype.itemsize,
                           whh_t.dtype.itemsize, jnp.dtype(out_dtype).itemsize)
    unroll = max(1, min(8, tt))      # bound vreg pressure of the unrolled gate values
    kernel = functools.partial(_lstm_fused_kernel, hidden_size=H, tt=tt, unroll=unroll)
    y, cn = pl.pallas_call(
        kernel,
        out_shape=(jax.ShapeDtypeStruct((T, Bp, H), out_dtype),
                   jax.ShapeDtypeStruct((Bp, H), jnp.float32)),
        grid_spec=pltpu.PrefetchScalarGridSpec(
            num_scalar_prefetch=0,
            grid=(T // tt,),
            in_specs=[
                pl.BlockSpec((tt, Bp, C), lambda i: (i, 0, 0)),
                # Constant-index blocks: fetched once, kept resident across the grid.
                pl.BlockSpec((C, G), lambda i: (0, 0)),
                pl.BlockSpec((1, G), lambda i: (0, 0)),
                pl.BlockSpec((H, G), lambda i: (0, 0)),
                pl.BlockSpec((Bp, H), lambda i: (0, 0)),
                pl.BlockSpec((Bp, H), lambda i: (0, 0)),
            ],
            out_specs=[
                pl.BlockSpec((tt, Bp, H), lambda i: (i, 0, 0)),
                pl.BlockSpec((Bp, H), lambda i: (0, 0)),
            ],
            scratch_shapes=[
                pltpu.VMEM((tt, Bp, G), jnp.float32),   # chunk x-path gate pre-activations
                pltpu.VMEM((Bp, H), jnp.float32),       # h carry across chunks
                pltpu.VMEM((Bp, H), jnp.float32),       # c carry across chunks
            ],
        ),
        compiler_params=pltpu.CompilerParams(
            dimension_semantics=("arbitrary",),
            vmem_limit_bytes=_VMEM_LIMIT_BYTES),
    )(x_tm, wih_t_folded, bias_row, whh_t, h0, c0)
    return y, cn


# ----------------------------- RNNLayer forward -----------------------------
def init_rnn_layer_params(key, input_size, hidden_size):
    k1, k2 = jax.random.split(key)
    bound = 1.0 / math.sqrt(hidden_size)
    return {
        "bn_gamma": jnp.ones((input_size,), jnp.float32),
        "bn_beta": jnp.zeros((input_size,), jnp.float32),
        "w_ih": jax.random.uniform(k1, (4 * hidden_size, input_size),
                                   jnp.float32, -bound, bound),
        "w_hh": jax.random.uniform(k2, (4 * hidden_size, hidden_size),
                                   jnp.float32, -bound, bound),
    }


def _reorder_gate_rows(w):
    """PyTorch LSTM gate row order [i, f, g, o] -> [i, f, o, g] (sigmoid-contiguous)."""
    h = w.shape[0] // 4
    return jnp.concatenate([w[:2 * h], w[3 * h:], w[2 * h:3 * h]], axis=0)


def rnn_layer_forward(x, params, hx=None, matmul_dtype=None):
    T, B, C = x.shape
    H = params["w_hh"].shape[1]
    N = T * B

    # 1) Streaming BN statistics (training-mode / biased variance, eps=1e-5).
    col_sum, col_sq = bn_column_stats(x.reshape(N, C))
    mean = col_sum.reshape(C) / N
    # TODO(synk): single-pass E[x^2]-E[x]^2 can cancel when |mean| >> std; switch to a
    # shifted two-pass variance if that regime matters for real data.
    var = jnp.maximum(col_sq.reshape(C) / N - mean * mean, 0.0)
    scale = params["bn_gamma"] * lax.rsqrt(var + 1e-5)           # (C,)
    shift = params["bn_beta"] - mean * scale                     # (C,)

    # 2) Fold BN affine into the input projection; reorder gates to [i, f, o, g].
    w_ih_r = _reorder_gate_rows(params["w_ih"])                  # (4H, C)
    w_hh_r = _reorder_gate_rows(params["w_hh"])                  # (4H, H)
    wih_t_folded = (w_ih_r * scale[None, :]).T                   # (C, 4H)
    bias_row = (shift @ w_ih_r.T).reshape(1, 4 * H)              # (1, 4H)
    whh_t = w_hh_r.T                                             # (H, 4H)
    if matmul_dtype is not None:                                 # e.g. jnp.bfloat16 for full MXU rate
        wih_t_folded = wih_t_folded.astype(matmul_dtype)
        whh_t = whh_t.astype(matmul_dtype)

    # 3) Pad batch to a sublane multiple so chunk reshapes / y stores stay tile-aligned.
    Bp = _round_up(B, 8)
    x_p = x if Bp == B else jnp.pad(x, ((0, 0), (0, Bp - B), (0, 0)))
    if hx is None:
        h0 = jnp.zeros((Bp, H), jnp.float32)
        c0 = jnp.zeros((Bp, H), jnp.float32)
    else:
        h0 = hx[0].reshape(B, H).astype(jnp.float32)
        c0 = hx[1].reshape(B, H).astype(jnp.float32)
        if Bp != B:
            h0 = jnp.pad(h0, ((0, Bp - B), (0, 0)))
            c0 = jnp.pad(c0, ((0, Bp - B), (0, 0)))

    # 4) Fused BN-folded projection + sequential recurrence.
    y_p, cn_p = lstm_bn_fused(x_p, wih_t_folded, bias_row, whh_t, h0, c0, out_dtype=x.dtype)
    y = y_p[:, :B, :]
    cn = cn_p[:B]                          # kept f32 (no precision loss vs. the carried state)
    hn = y[-1]                             # h_n == last output
    return y, (hn[None, :, :], cn[None, :, :])


# ----------------------- pure-JAX reference (sanity check) -----------------------
def _reference(x, params):
    T, B, C = x.shape
    H = params["w_hh"].shape[1]
    x2 = x.reshape(T * B, C)
    mean = jnp.mean(x2, axis=0, keepdims=True)
    var = jnp.mean((x2 - mean) ** 2, axis=0, keepdims=True)
    xn = (x2 - mean) / jnp.sqrt(var + 1e-5) * params["bn_gamma"] + params["bn_beta"]
    xn = xn.reshape(T, B, C)

    def step(carry, x_t):
        h, c = carry
        gates = x_t @ params["w_ih"].T + h @ params["w_hh"].T
        i, f, g, o = jnp.split(gates, 4, axis=-1)
        c = jax.nn.sigmoid(f) * c + jax.nn.sigmoid(i) * jnp.tanh(g)
        h = jax.nn.sigmoid(o) * jnp.tanh(c)
        return (h, c), h

    (hn, cn), ys = jax.lax.scan(step,
                                (jnp.zeros((B, H)), jnp.zeros((B, H))), xn)
    return ys, hn, cn


if __name__ == "__main__":
    T, B, C, H = 8, 2, 16, 32
    key = jax.random.PRNGKey(0)
    kx, kp = jax.random.split(key)
    x = jax.random.normal(kx, (T, B, C), jnp.float32)
    params = init_rnn_layer_params(kp, C, H)

    y, (h_n, c_n) = rnn_layer_forward(x, params)
    jax.block_until_ready((y, h_n, c_n))

    y_ref, hn_ref, cn_ref = _reference(x, params)
    assert y.shape == (T, B, H) and h_n.shape == (1, B, H) and c_n.shape == (1, B, H)
    assert jnp.allclose(y, y_ref, atol=1e-4, rtol=1e-4)
    assert jnp.allclose(h_n[0], hn_ref, atol=1e-4, rtol=1e-4)
    assert jnp.allclose(c_n[0], cn_ref, atol=1e-4, rtol=1e-4)

    print("KERNEL_OK")
</pallas_src>

<mosaic_0001>
module attributes {stable_mosaic.version = 11 : i64} {
  func.func @_bn_stats_kernel(%arg0: i32, %arg1: memref<16x16xf32, #tpu.memory_space<vmem>>, %arg2: memref<1x16xf32, #tpu.memory_space<vmem>>, %arg3: memref<1x16xf32, #tpu.memory_space<vmem>>, %arg4: memref<8x16xf32, #tpu.memory_space<vmem>>, %arg5: memref<8x16xf32, #tpu.memory_space<vmem>>) attributes {dimension_semantics = [#tpu.dimension_semantics<arbitrary>], iteration_bounds = array<i64: 1>, scalar_prefetch = 0 : i64, scratch_operands = 2 : i64, tpu.core_type = #tpu.core_type<tc>, window_params = [{transform_indices = @transform_0, window_bounds = array<i64: 16, 16>}, {pipeline_mode = #tpu.pipeline_mode<synchronous>, transform_indices = @transform_1, window_bounds = array<i64: 1, 16>}, {pipeline_mode = #tpu.pipeline_mode<synchronous>, transform_indices = @transform_2, window_bounds = array<i64: 1, 16>}]} {
    %c0_i32 = arith.constant 0 : i32
    %0 = arith.cmpi eq, %arg0, %c0_i32 : i32
    %1 = arith.extui %0 : i1 to i32
    %c0_i32_0 = arith.constant 0 : i32
    %2 = arith.cmpi ne, %1, %c0_i32_0 : i32
    scf.if %2 {
      %cst_13 = arith.constant 0.000000e+00 : f32
      %17 = vector.broadcast %cst_13 : f32 to vector<8x16xf32>
      %c0_14 = arith.constant 0 : index
      %c0_15 = arith.constant 0 : index
      %18 = vector.load %arg4[%c0_14, %c0_15] : memref<8x16xf32, #tpu.memory_space<vmem>>, vector<8x16xf32>
      tpu.vector_store %arg4[%c0_14, %c0_15], %17 {strides = array<i32>} : memref<8x16xf32, #tpu.memory_space<vmem>>, vector<8x16xf32>,
      %cst_16 = arith.constant 0.000000e+00 : f32
      %19 = vector.broadcast %cst_16 : f32 to vector<8x16xf32>
      %c0_17 = arith.constant 0 : index
      %c0_18 = arith.constant 0 : index
      %20 = vector.load %arg5[%c0_17, %c0_18] : memref<8x16xf32, #tpu.memory_space<vmem>>, vector<8x16xf32>
      tpu.vector_store %arg5[%c0_17, %c0_18], %19 {strides = array<i32>} : memref<8x16xf32, #tpu.memory_space<vmem>>, vector<8x16xf32>,
    } else {
    }
    %c0 = arith.constant 0 : index
    %c0_1 = arith.constant 0 : index
    %3 = vector.load %arg1[%c0, %c0_1] : memref<16x16xf32, #tpu.memory_space<vmem>>, vector<16x16xf32>
    %4 = vector.shape_cast %3 : vector<16x16xf32> to vector<2x8x16xf32>
    %c0_2 = arith.constant 0 : index
    %c0_3 = arith.constant 0 : index
    %5 = vector.load %arg4[%c0_2, %c0_3] : memref<8x16xf32, #tpu.memory_space<vmem>>, vector<8x16xf32>
    %cst = arith.constant dense<0.000000e+00> : vector<8x16xf32>
    %6 = vector.multi_reduction <add>, %4, %cst [0] : vector<2x8x16xf32> to vector<8x16xf32>
    %7 = arith.addf %5, %6 : vector<8x16xf32>
    %c0_4 = arith.constant 0 : index
    %c0_5 = arith.constant 0 : index
    %8 = vector.load %arg4[%c0_4, %c0_5] : memref<8x16xf32, #tpu.memory_space<vmem>>, vector<8x16xf32>
    tpu.vector_store %arg4[%c0_4, %c0_5], %7 {strides = array<i32>} : memref<8x16xf32, #tpu.memory_space<vmem>>, vector<8x16xf32>,
    %c0_6 = arith.constant 0 : index
    %c0_7 = arith.constant 0 : index
    %9 = vector.load %arg5[%c0_6, %c0_7] : memref<8x16xf32, #tpu.memory_space<vmem>>, vector<8x16xf32>
    %10 = arith.mulf %4, %4 : vector<2x8x16xf32>
    %cst_8 = arith.constant dense<0.000000e+00> : vector<8x16xf32>
    %11 = vector.multi_reduction <add>, %10, %cst_8 [0] : vector<2x8x16xf32> to vector<8x16xf32>
    %12 = arith.addf %9, %11 : vector<8x16xf32>
    %c0_9 = arith.constant 0 : index
    %c0_10 = arith.constant 0 : index
    %13 = vector.load %arg5[%c0_9, %c0_10] : memref<8x16xf32, #tpu.memory_space<vmem>>, vector<8x16xf32>
    tpu.vector_store %arg5[%c0_9, %c0_10], %12 {strides = array<i32>} : memref<8x16xf32, #tpu.memory_space<vmem>>, vector<8x16xf32>,
    %c0_i32_11 = arith.constant 0 : i32
    %14 = arith.cmpi eq, %arg0, %c0_i32_11 : i32
    %15 = arith.extui %14 : i1 to i32
    %c0_i32_12 = arith.constant 0 : i32
    %16 = arith.cmpi ne, %15, %c0_i32_12 : i32
    scf.if %16 {
      %c0_13 = arith.constant 0 : index
      %c0_14 = arith.constant 0 : index
      %17 = vector.load %arg4[%c0_13, %c0_14] : memref<8x16xf32, #tpu.memory_space<vmem>>, vector<8x16xf32>
      %cst_15 = arith.constant dense<0.000000e+00> : vector<16xf32>
      %18 = vector.multi_reduction <add>, %17, %cst_15 [0] : vector<8x16xf32> to vector<16xf32>
      %19 = vector.shape_cast %18 : vector<16xf32> to vector<1x16xf32>
      %c0_16 = arith.constant 0 : index
      %c0_17 = arith.constant 0 : index
      %20 = vector.load %arg2[%c0_16, %c0_17] : memref<1x16xf32, #tpu.memory_space<vmem>>, vector<1x16xf32>
      tpu.vector_store %arg2[%c0_16, %c0_17], %19 {strides = array<i32>} : memref<1x16xf32, #tpu.memory_space<vmem>>, vector<1x16xf32>,
      %c0_18 = arith.constant 0 : index
      %c0_19 = arith.constant 0 : index
      %21 = vector.load %arg5[%c0_18, %c0_19] : memref<8x16xf32, #tpu.memory_space<vmem>>, vector<8x16xf32>
      %cst_20 = arith.constant dense<0.000000e+00> : vector<16xf32>
      %22 = vector.multi_reduction <add>, %21, %cst_20 [0] : vector<8x16xf32> to vector<16xf32>
      %23 = vector.shape_cast %22 : vector<16xf32> to vector<1x16xf32>
      %c0_21 = arith.constant 0 : index
      %c0_22 = arith.constant 0 : index
      %24 = vector.load %arg3[%c0_21, %c0_22] : memref<1x16xf32, #tpu.memory_space<vmem>>, vector<1x16xf32>
      tpu.vector_store %arg3[%c0_21, %c0_22], %23 {strides = array<i32>} : memref<1x16xf32, #tpu.memory_space<vmem>>, vector<1x16xf32>,
    } else {
    }
    return
  }
  func.func @transform_0(%arg0: i32) -> (i32, i32) {
    %c0_i32 = arith.constant 0 : i32
    %c0_i32_0 = arith.constant 0 : i32
    return %arg0, %c0_i32 : i32, i32
  }
  func.func @transform_1(%arg0: i32) -> (i32, i32) {
    %c0_i32 = arith.constant 0 : i32
    %c0_i32_0 = arith.constant 0 : i32
    %c0_i32_1 = arith.constant 0 : i32
    return %c0_i32, %c0_i32_0 : i32, i32
  }
  func.func @transform_2(%arg0: i32) -> (i32, i32) {
    %c0_i32 = arith.constant 0 : i32
    %c0_i32_0 = arith.constant 0 : i32
    %c0_i32_1 = arith.constant 0 : i32
    return %c0_i32, %c0_i32_0 : i32, i32
  }
}

</mosaic_0001>

<llo_original>
// kernel: tpu_custom_call.1
$region0: #{tpu_custom_call.1}
  #allocation0 [shape = 'u32[]', space=smem, size = 0x4, offset = 0x4, fixed_abs, tag = 'smem constant byte address 0x4 - core index']
  #allocation1 [shape = 'u32[72,128]{1,0:T(1,128)}', space=vmem, size = 0x9000, scoped, tag = 'internal scratch']
  #allocation2 [shape = 'f32[8,16]{1,0:T(8,128)}', space=vmem, size = 0x1000, scoped, tag = 'scratch operand']
  #allocation3 [shape = 'f32[8,16]{1,0:T(8,128)}', space=vmem, size = 0x1000, scoped, tag = 'scratch operand']
  %s0 = inlined_call_operand.hbm [shape: f32[16,16], index: 0, kind: input, shape index: {}]
  %s1 = inlined_call_operand.hbm [shape: f32[1,16], index: 1, kind: output, shape index: {0}]
  %s2 = inlined_call_operand.hbm [shape: f32[1,16], index: 2, kind: output, shape index: {1}]
  %3 = xla_tuple %s1, %s2
  %s4 = sld [smem:[#allocation0]]
  $region34: #{tpu_custom_call.1} parent=0
    _
  %s6 = ssub.s32 1, %s4
  %s7 = scalar_select 0, %s6, %s4
  $region1: #{tpu_custom_call.1} parent=0
    #allocation4 [shape = 'u8[8192]{0}', space=vmem, size = 0x2000, scoped, tag = 'input window, operand 0, single buffered']
    #allocation5 [shape = 's32[1]{0}', space=sflag, size = 0x4, scoped, tag = 'scoped memory for tpu_custom_call.1']
    #allocation6 [shape = 's32[1]{0}', space=sflag, size = 0x4, scoped, tag = 'scoped memory for tpu_custom_call.1']
    #allocation7 [shape = 'u8[512]{0}', space=vmem, size = 0x400, scoped, tag = 'output window, operand 0, single buffered']
    #allocation8 [shape = 'u8[512]{0}', space=vmem, size = 0x400, scoped, tag = 'output window, operand 1, single buffered']
    #allocation9 [shape = 's32[1]{0}', space=sflag, size = 0x4, scoped, tag = 'scoped memory for tpu_custom_call.1']
    %8 = vsyncpa [#allocation5], 0
    %9 = vsyncpa [#allocation6], 0
    %10 = vsyncpa [#allocation9], 0
    // Predicated region
    $region2: #{tpu_custom_call.1} parent=1 // pred_check
      _
    $region3: #{tpu_custom_call.1} parent=1 // pred_check_branch
      %12 = sbr.rel (0) target = $region5
    $region4: #{tpu_custom_call.1} parent=1 // pred_region
      %14 = vsyncadd [#allocation5], 0
      %s15 = sshll.u32 %s0, 4
      %s16 = int_to_ptr.hbm [resolvable:$true] %s15
      %s17 = sshll.u32 [#allocation4], 4
      %s18 = int_to_ptr.vmem [resolvable:$true] %s17
      %23 = dma.hbm_to_vmem [thread:$0]  %s16, 256, %s18, [#allocation5], 128, 128, 8
    $region5: #{tpu_custom_call.1} parent=1 // pred_fallthru
      _
    // Predicated region
    $region6: #{tpu_custom_call.1} parent=1 // pred_check
      _
    $region7: #{tpu_custom_call.1} parent=1 // pred_check_branch
      %25 = sbr.rel (0) target = $region9
    $region8: #{tpu_custom_call.1} parent=1 // pred_region
      %27 = dma.done [#allocation5], 256
    $region9: #{tpu_custom_call.1} parent=1 // pred_fallthru
      _
    %p28 = scmp.eq.s32.totalorder 0, 0
    // Predicated region
    $region10: #{tpu_custom_call.1} parent=1 // pred_check
      %p29 = pneg %p28
    $region11: #{tpu_custom_call.1} parent=1 // pred_check_branch
      %31 = sbr.rel (%p29) target = $region13
    $region12: #{tpu_custom_call.1} parent=1 // pred_region
      %vm32 = vcmask 130048
      %33 = vst.msk [vmem:[#allocation2] sm:$0xff] %vm32, 0.0
      %34 = vst.msk [vmem:[#allocation3] sm:$0xff] %vm32, 0.0
    $region13: #{tpu_custom_call.1} parent=1 // pred_fallthru
      _
    %v35 = vld [vmem:[#allocation4] sm:$0xff]
    %v36 = vld [vmem:[#allocation4 + $0x8] sm:$0xff]
    %v37 = vld [vmem:[#allocation2] sm:$0xff]
    %vm38 = vcmask 130048
    %v39 = vsel %vm38, %v35, 0.0
    %v40 = vsel %vm38, %v36, 0.0
    %v41 = vadd.f32 %v39, %v40
    %v42 = vadd.f32 %v37, %v41
    %43 = vst.msk [vmem:[#allocation2] sm:$0xff] %vm38, %v42
    %v44 = vld [vmem:[#allocation3] sm:$0xff]
    %v45 = vmul.f32 %v35, %v35
    %v46 = vmul.f32 %v36, %v36
    %v47 = vsel %vm38, %v45, 0.0
    %v48 = vsel %vm38, %v46, 0.0
    %v49 = vadd.f32 %v47, %v48
    %v50 = vadd.f32 %v44, %v49
    %51 = vst.msk [vmem:[#allocation3] sm:$0xff] %vm38, %v50
    // Predicated region
    $region14: #{tpu_custom_call.1} parent=1 // pred_check
      %p52 = pneg %p28
    $region15: #{tpu_custom_call.1} parent=1 // pred_check_branch
      %54 = sbr.rel (%p52) target = $region17
    $region16: #{tpu_custom_call.1} parent=1 // pred_region
      %v55 = vld [vmem:[#allocation2] sm:$0xff]
      %v56 = vsel %vm38, %v55, 0.0
      %v57 = vrot.slane %v56, 4
      %v58 = vadd.f32 %v56, %v57
      %v59 = vrot.slane %v58, 2
      %v60 = vadd.f32 %v58, %v59
      %v61 = vrot.slane %v60, 1
      %v62 = vadd.f32 %v60, %v61
      %vm63 = vcmask 122880
      %64 = vst.msk [vmem:[#allocation7] sm:$0x1] %vm63, %v62
      %v65 = vld [vmem:[#allocation3] sm:$0xff]
      %v66 = vsel %vm38, %v65, 0.0
      %v67 = vrot.slane %v66, 4
      %v68 = vadd.f32 %v66, %v67
      %v69 = vrot.slane %v68, 2
      %v70 = vadd.f32 %v68, %v69
      %v71 = vrot.slane %v70, 1
      %v72 = vadd.f32 %v70, %v71
      %73 = vst.msk [vmem:[#allocation8] sm:$0x1] %vm63, %v72
    $region17: #{tpu_custom_call.1} parent=1 // pred_fallthru
      _
    // Predicated region
    $region18: #{tpu_custom_call.1} parent=1 // pred_check
      _
    $region19: #{tpu_custom_call.1} parent=1 // pred_check_branch
      %75 = sbr.rel (0) target = $region21
    $region20: #{tpu_custom_call.1} parent=1 // pred_region
      %77 = vsyncadd [#allocation6], 0
      %s79 = sshll.u32 [#allocation7], 4
      %s80 = int_to_ptr.vmem [resolvable:$true] %s79
      %s81 = sshll.u32 %s1, 4
      %s82 = int_to_ptr.hbm [resolvable:$true] %s81
      %84 = dma.vmem_to_hbm [thread:$0]  %s80, 16, %s82, [#allocation6]
    $region21: #{tpu_custom_call.1} parent=1 // pred_fallthru
      _
    // Predicated region
    $region22: #{tpu_custom_call.1} parent=1 // pred_check
      _
    $region23: #{tpu_custom_call.1} parent=1 // pred_check_branch
      %86 = sbr.rel (0) target = $region25
    $region24: #{tpu_custom_call.1} parent=1 // pred_region
      %88 = vsyncadd [#allocation9], 0
      %s90 = sshll.u32 [#allocation8], 4
      %s91 = int_to_ptr.vmem [resolvable:$true] %s90
      %s92 = sshll.u32 %s2, 4
      %s93 = int_to_ptr.hbm [resolvable:$true] %s92
      %95 = dma.vmem_to_hbm [thread:$0]  %s91, 16, %s93, [#allocation9]
    $region25: #{tpu_custom_call.1} parent=1 // pred_fallthru
      _
    // Predicated region
    $region26: #{tpu_custom_call.1} parent=1 // pred_check
      _
    $region27: #{tpu_custom_call.1} parent=1 // pred_check_branch
      %97 = sbr.rel (0) target = $region29
    $region28: #{tpu_custom_call.1} parent=1 // pred_region
      %99 = dma.done [#allocation6], 16
    $region29: #{tpu_custom_call.1} parent=1 // pred_fallthru
      _
    // Predicated region
    $region30: #{tpu_custom_call.1} parent=1 // pred_check
      _
    $region31: #{tpu_custom_call.1} parent=1 // pred_check_branch
      %101 = sbr.rel (0) target = $region33
    $region32: #{tpu_custom_call.1} parent=1 // pred_region
      %103 = dma.done [#allocation9], 16
    $region33: #{tpu_custom_call.1} parent=1 // pred_fallthru
      _
    %104 = vsyncpa [#allocation5], 1
    %105 = vsyncpa [#allocation6], 1
    %106 = vsyncpa [#allocation9], 1

</llo_original>
